<compile_context>
chip_gen: v6e
topology: v6e:2x2x1
jax: 0.10.0
libtpu: 0.0.40
codegen_flags: <defaults>
</compile_context>

<pallas_src>
import functools

import jax
import jax.numpy as jnp
from jax.experimental import pallas as pl
from jax.experimental.pallas import tpu as pltpu

MARGIN = 0.2
GAMMA = 5.0


def _contrastive_tile_kernel(score_ref, label_ref, lse_ref, simcol_ref, *,
                             gamma, valid_m, tile_m):
    # Load narrow, compute wide (f32): v5e has no bf16 VPU/EUP path and f32
    # accumulation is the numerically right choice for logsumexp anyway.
    score = score_ref[...].astype(jnp.float32) * gamma            # (N, TILE_M)
    label_f = label_ref[...].astype(jnp.float32)                  # (N, TILE_M)

    if valid_m is not None:
        # Ragged last block: out-of-range lanes contain unspecified VMEM data
        # on TPU.  Zero them so the sim partials stay exact (lse garbage lanes
        # would be dropped at writeback anyway, but zeroing keeps them finite).
        col = (pl.program_id(0) * tile_m
               + jax.lax.broadcasted_iota(jnp.int32, (1, tile_m), 1))
        valid = col < valid_m
        score = jnp.where(valid, score, 0.0)
        label_f = jnp.where(valid, label_f, 0.0)

    # Per-column partial of sim = (score * label).sum()  (uses the label
    # *values*, exactly like the PyTorch module).
    simcol_ref[...] = jnp.sum(score * label_f, axis=0, keepdims=True)

    # neg = score * label.logical_not(): zero wherever label != 0.  Those
    # zeros still contribute exp(0) = 1 to the logsumexp, exactly as in the
    # PyTorch module (intentional, not a bug).  Mask derived from the already
    # upcast label_f (single compare path).
    neg = jnp.where(label_f != 0.0, 0.0, score)

    # Numerically stable logsumexp over dim 0 (sublane axis).
    mx = jnp.max(neg, axis=0, keepdims=True)                      # (1, TILE_M)
    lse_ref[...] = mx + jnp.log(jnp.sum(jnp.exp(neg - mx), axis=0, keepdims=True))


def _pick_tile_m(n, m128, score_bytes, label_bytes, *,
                 target_block_bytes=2 * 1024 * 1024, max_tile=8192):
    # HBM-bound kernel: aim for ~1-2 MiB of combined (score+label) bytes per
    # block so the fixed per-grid-step overhead amortizes and the strided DMA
    # row segments are long.  Double-buffered that is only a few MiB of VMEM,
    # far below the scoped limit on every generation (v7x included).
    per_col = n * (score_bytes + label_bytes)
    tile = target_block_bytes // max(per_col, 1)
    tile = (tile // 128) * 128
    return int(max(128, min(tile, max_tile, m128)))


def contrastive_loss(score, label, *, margin=MARGIN, gamma=GAMMA, tile_m=None):
    assert score.ndim == 2 and score.shape == label.shape
    n, m = score.shape
    m128 = pl.cdiv(m, 128) * 128

    if tile_m is None:
        tile_m = _pick_tile_m(n, m128, score.dtype.itemsize, label.dtype.itemsize)
    tile_m = max(128, (int(tile_m) // 128) * 128)
    # Never let the tile exceed the 128-padded M (a larger tile only adds
    # useless out-of-bounds lanes to every DMA).
    tile_m = min(tile_m, m128)
    # Keep >= 2 grid steps whenever M allows it, so both v7x TensorCores pull
    # blocks for this memory-bound kernel (costs ~0.35 us on single-TC chips).
    if m128 >= 2 * 128:
        tile_m = min(tile_m, pl.cdiv(m128 // 128, 2) * 128)

    grid_m = pl.cdiv(m, tile_m)
    ragged = (m % tile_m) != 0

    kernel = functools.partial(
        _contrastive_tile_kernel,
        gamma=float(gamma),
        valid_m=(m if ragged else None),
        tile_m=tile_m,
    )

    lse, simcol = pl.pallas_call(
        kernel,
        out_shape=(
            jax.ShapeDtypeStruct((1, m), jnp.float32),
            jax.ShapeDtypeStruct((1, m), jnp.float32),
        ),
        grid=(grid_m,),
        in_specs=[
            pl.BlockSpec((n, tile_m), lambda j: (0, j)),
            pl.BlockSpec((n, tile_m), lambda j: (0, j)),
        ],
        out_specs=(
            pl.BlockSpec((1, tile_m), lambda j: (0, j)),   # lane-dense outputs
            pl.BlockSpec((1, tile_m), lambda j: (0, j)),
        ),
        compiler_params=pltpu.CompilerParams(
            dimension_semantics=("parallel",),             # megacore sharding
            vmem_limit_bytes=32 * 1024 * 1024,
        ),
    )(score, label)

    # O(M) epilogue - trivially cheap in XLA.  Out-of-range lanes of the last
    # partial block were masked to 0 in-kernel and dropped at writeback.
    sim = jnp.sum(simcol)
    return jnp.sum(jnp.maximum(lse[0] - sim + margin, 0.0))


def contrastive_loss_ref(score, label, *, margin=MARGIN, gamma=GAMMA):
    # Pure-JAX reference mirroring the PyTorch forward.
    score = score.astype(jnp.float32) * gamma
    label_f = label.astype(jnp.float32)
    sim = jnp.sum(score * label_f)
    neg = jnp.where(label_f != 0.0, 0.0, score)
    lse = jax.scipy.special.logsumexp(neg, axis=0)
    return jnp.sum(jnp.maximum(lse - sim + margin, 0.0))


if __name__ == "__main__":
    key = jax.random.PRNGKey(0)

    cases = [
        # (N, M, score_dtype, tile_m)
        (32, 1024, jnp.float32, None),   # auto tile, >=2 grid steps, f32 scores
        (32, 500, jnp.float32, 256),     # M not tile- or 128-aligned -> in-kernel mask
        (8, 640, jnp.bfloat16, None),    # bf16 scores straight into the kernel, ragged
        (4, 128, jnp.float32, None),     # tiny single-block case
    ]
    for i, (n, m, sdt, tile_m) in enumerate(cases):
        k_s, k_l, key = jax.random.split(key, 3)
        score = jax.random.normal(k_s, (n, m), dtype=jnp.float32).astype(sdt)
        label = (jax.random.uniform(k_l, (n, m)) < 0.1).astype(jnp.int8)

        loss = contrastive_loss(score, label, tile_m=tile_m)
        jax.block_until_ready(loss)

        ref = contrastive_loss_ref(score, label)
        assert jnp.allclose(loss, ref, rtol=1e-3, atol=1e-2), (i, loss, ref)

    print("KERNEL_OK")
</pallas_src>

<mosaic_0001>
module attributes {stable_mosaic.version = 11 : i64} {
  func.func @_contrastive_tile_kernel(%arg0: i32, %arg1: memref<32x512xf32, #tpu.memory_space<vmem>>, %arg2: memref<32x512xi8, #tpu.memory_space<vmem>>, %arg3: memref<1x512xf32, #tpu.memory_space<vmem>>, %arg4: memref<1x512xf32, #tpu.memory_space<vmem>>) attributes {dimension_semantics = [#tpu.dimension_semantics<parallel>], iteration_bounds = array<i64: 2>, scalar_prefetch = 0 : i64, scratch_operands = 0 : i64, tpu.core_type = #tpu.core_type<tc>, window_params = [{transform_indices = @transform_0, window_bounds = array<i64: 32, 512>}, {transform_indices = @transform_1, window_bounds = array<i64: 32, 512>}, {transform_indices = @transform_2, window_bounds = array<i64: 1, 512>}, {transform_indices = @transform_3, window_bounds = array<i64: 1, 512>}]} {
    %c0 = arith.constant 0 : index
    %c0_0 = arith.constant 0 : index
    %0 = vector.load %arg1[%c0, %c0_0] : memref<32x512xf32, #tpu.memory_space<vmem>>, vector<32x512xf32>
    %cst = arith.constant 5.000000e+00 : f32
    %1 = vector.broadcast %cst : f32 to vector<32x512xf32>
    %2 = arith.mulf %0, %1 : vector<32x512xf32>
    %c0_1 = arith.constant 0 : index
    %c0_2 = arith.constant 0 : index
    %3 = vector.load %arg2[%c0_1, %c0_2] : memref<32x512xi8, #tpu.memory_space<vmem>>, vector<32x512xi8>
    %4 = arith.sitofp %3 : vector<32x512xi8> to vector<32x512xf32>
    %5 = arith.mulf %2, %4 : vector<32x512xf32>
    %cst_3 = arith.constant dense<0.000000e+00> : vector<512xf32>
    %6 = vector.multi_reduction <add>, %5, %cst_3 [0] : vector<32x512xf32> to vector<512xf32>
    %7 = vector.shape_cast %6 : vector<512xf32> to vector<1x512xf32>
    %c0_4 = arith.constant 0 : index
    %c0_5 = arith.constant 0 : index
    %8 = vector.load %arg4[%c0_4, %c0_5] : memref<1x512xf32, #tpu.memory_space<vmem>>, vector<1x512xf32>
    tpu.vector_store %arg4[%c0_4, %c0_5], %7 {strides = array<i32>} : memref<1x512xf32, #tpu.memory_space<vmem>>, vector<1x512xf32>,
    %cst_6 = arith.constant 0.000000e+00 : f32
    %9 = vector.broadcast %cst_6 : f32 to vector<32x512xf32>
    %10 = arith.cmpf one, %4, %9 : vector<32x512xf32>
    %cst_7 = arith.constant 0.000000e+00 : f32
    %11 = vector.broadcast %cst_7 : f32 to vector<32x512xf32>
    %12 = arith.select %10, %11, %2 : vector<32x512xi1>, vector<32x512xf32>
    %cst_8 = arith.constant dense<0xFF800000> : vector<512xf32>
    %13 = vector.multi_reduction <maximumf>, %12, %cst_8 [0] : vector<32x512xf32> to vector<512xf32>
    %14 = vector.shape_cast %13 : vector<512xf32> to vector<1x512xf32>
    %15 = vector.broadcast %14 : vector<1x512xf32> to vector<32x512xf32>
    %16 = arith.subf %12, %15 : vector<32x512xf32>
    %17 = math.exp %16 : vector<32x512xf32>
    %cst_9 = arith.constant dense<0.000000e+00> : vector<512xf32>
    %18 = vector.multi_reduction <add>, %17, %cst_9 [0] : vector<32x512xf32> to vector<512xf32>
    %19 = vector.shape_cast %18 : vector<512xf32> to vector<1x512xf32>
    %20 = math.log %19 : vector<1x512xf32>
    %21 = arith.addf %14, %20 : vector<1x512xf32>
    %c0_10 = arith.constant 0 : index
    %c0_11 = arith.constant 0 : index
    %22 = vector.load %arg3[%c0_10, %c0_11] : memref<1x512xf32, #tpu.memory_space<vmem>>, vector<1x512xf32>
    tpu.vector_store %arg3[%c0_10, %c0_11], %21 {strides = array<i32>} : memref<1x512xf32, #tpu.memory_space<vmem>>, vector<1x512xf32>,
    return
  }
  func.func @transform_0(%arg0: i32) -> (i32, i32) {
    %c0_i32 = arith.constant 0 : i32
    %c0_i32_0 = arith.constant 0 : i32
    return %c0_i32, %arg0 : i32, i32
  }
  func.func @transform_1(%arg0: i32) -> (i32, i32) {
    %c0_i32 = arith.constant 0 : i32
    %c0_i32_0 = arith.constant 0 : i32
    return %c0_i32, %arg0 : i32, i32
  }
  func.func @transform_2(%arg0: i32) -> (i32, i32) {
    %c0_i32 = arith.constant 0 : i32
    %c0_i32_0 = arith.constant 0 : i32
    return %c0_i32, %arg0 : i32, i32
  }
  func.func @transform_3(%arg0: i32) -> (i32, i32) {
    %c0_i32 = arith.constant 0 : i32
    %c0_i32_0 = arith.constant 0 : i32
    return %c0_i32, %arg0 : i32, i32
  }
}

</mosaic_0001>

<llo_original>
// kernel: tpu_custom_call.1
$region0: #{tpu_custom_call.1}
  #allocation0 [shape = 'u32[]', space=smem, size = 0x4, offset = 0x4, fixed_abs, tag = 'smem constant byte address 0x4 - core index']
  #allocation1 [shape = 'u32[144,128]{1,0:T(1,128)}', space=vmem, size = 0x12000, scoped, tag = 'internal scratch']
  %s0 = inlined_call_operand.hbm [shape: f32[32,1024], index: 0, kind: input, shape index: {}]
  %s1 = inlined_call_operand.hbm [shape: s8[32,1024], index: 1, kind: input, shape index: {}]
  %s2 = inlined_call_operand.hbm [shape: f32[1,1024], index: 2, kind: output, shape index: {0}]
  %s3 = inlined_call_operand.hbm [shape: f32[1,1024], index: 3, kind: output, shape index: {1}]
  %4 = xla_tuple %s2, %s3
  %s5 = sld [smem:[#allocation0]]
  $region57: #{tpu_custom_call.1} parent=0
    _
  %s7 = ssub.s32 1, %s5
  %s8 = scalar_select 0, %s7, %s5
  $region1: #{tpu_custom_call.1} parent=0
    #allocation2 [shape = 'u8[131072]{0}', space=vmem, size = 0x20000, scoped, tag = 'input window, operand 0']
    #allocation3 [shape = 's32[2]{0}', space=sflag, size = 0x8, scoped, tag = 'scoped memory for tpu_custom_call.1']
    #allocation4 [shape = 's32[2]{0}', space=sflag, size = 0x8, scoped, tag = 'scoped memory for tpu_custom_call.1']
    #allocation5 [shape = 'u8[32768]{0}', space=vmem, size = 0x8000, scoped, tag = 'input window, operand 1']
    #allocation6 [shape = 's32[2]{0}', space=sflag, size = 0x8, scoped, tag = 'scoped memory for tpu_custom_call.1']
    #allocation7 [shape = 'u8[4096]{0}', space=vmem, size = 0x1000, scoped, tag = 'output window, operand 0']
    #allocation8 [shape = 'u8[4096]{0}', space=vmem, size = 0x1000, scoped, tag = 'output window, operand 1']
    #allocation9 [shape = 's32[2]{0}', space=sflag, size = 0x8, scoped, tag = 'scoped memory for tpu_custom_call.1']
    %9 = vsyncpa [#allocation3], 0
    %s10 = scalar_lea.sflag [#allocation3], 1
    %11 = vsyncpa %s10, 0
    %12 = vsyncpa [#allocation6], 0
    %s13 = scalar_lea.sflag [#allocation6], 1
    %14 = vsyncpa %s13, 0
    %15 = vsyncpa [#allocation4], 0
    %s16 = scalar_lea.sflag [#allocation4], 1
    %17 = vsyncpa %s16, 0
    %18 = vsyncpa [#allocation9], 0
    %s19 = scalar_lea.sflag [#allocation9], 1
    %20 = vsyncpa %s19, 0
    loop: start=0, step=1, limit=4
    $region2: #{tpu_custom_call.1} parent=1 // loop_pre_header
      _
    $region3: #{tpu_custom_call.1} parent=1 // loop_header
      %s22 = sphi 0, %s26
      %p23 = scmp.ge.s32.totalorder %s22, 4
      %s32 = sphi 0, %s34
      %s35 = sphi 0, %s32
      %s36 = sphi 0, %s35
      %s52 = sphi 0, %s36
      %s58 = sphi 0, %s60
      %s61 = sphi 0, %s58
      %s62 = sphi 0, %s61
      %s78 = sphi 0, %s62
      %s84 = sphi 0, %s86
      %s87 = sphi 0, %s84
      %s88 = sphi 0, %s87
      %s104 = sphi 0, %s88
      %s110 = sphi 0, %s112
      %s113 = sphi 0, %s110
      %s114 = sphi 0, %s113
      %s130 = sphi 0, %s114
    $region4: #{tpu_custom_call.1} parent=1 // loop_header_branch
      %25 = sbr.rel (%p23) target = $region8
    $region5: #{tpu_custom_call.1} parent=1 // loop_body
      %s27 = ssub.s32 %s22, 1
      %s28 = ssub.s32 %s22, 2
      %s29 = sadd.s32 %s22, 1
      %s30 = ssub.s32 %s22, %s29
      %p31 = scmp.eq.s32.totalorder %s30, 0
      %s33 = sadd.s32 %s32, 1
      %s34 = scalar_select %p31, %s32, %s33
      %p37 = pneg %p31
      %p38 = scmp.eq.s32.totalorder %s22, 1
      %p39 = por %p37, %p38
      %p40 = scmp.ne.s32.totalorder %s32, %s35
      %p41 = scmp.eq.s32.totalorder %s22, 0
      %p42 = por %p40, %p41
      %p43 = scmp.ne.s32.totalorder %s32, %s35
      %p44 = scmp.eq.s32.totalorder %s27, 1
      %p45 = por %p43, %p44
      %p46 = scmp.ne.s32.totalorder %s35, %s36
      %p47 = scmp.eq.s32.totalorder %s27, 0
      %p48 = por %p46, %p47
      %p49 = scmp.ne.s32.totalorder %s35, %s36
      %p50 = scmp.eq.s32.totalorder %s28, 1
      %p51 = por %p49, %p50
      %p53 = scmp.ne.s32.totalorder %s36, %s52
      %p54 = scmp.eq.s32.totalorder %s28, 0
      %p55 = por %p53, %p54
      %s56 = ssub.s32 %s22, %s29
      %p57 = scmp.eq.s32.totalorder %s56, 0
      %s59 = sadd.s32 %s58, 1
      %s60 = scalar_select %p57, %s58, %s59
      %p63 = pneg %p57
      %p64 = scmp.eq.s32.totalorder %s22, 1
      %p65 = por %p63, %p64
      %p66 = scmp.ne.s32.totalorder %s58, %s61
      %p67 = scmp.eq.s32.totalorder %s22, 0
      %p68 = por %p66, %p67
      %p69 = scmp.ne.s32.totalorder %s58, %s61
      %p70 = scmp.eq.s32.totalorder %s27, 1
      %p71 = por %p69, %p70
      %p72 = scmp.ne.s32.totalorder %s61, %s62
      %p73 = scmp.eq.s32.totalorder %s27, 0
      %p74 = por %p72, %p73
      %p75 = scmp.ne.s32.totalorder %s61, %s62
      %p76 = scmp.eq.s32.totalorder %s28, 1
      %p77 = por %p75, %p76
      %p79 = scmp.ne.s32.totalorder %s62, %s78
      %p80 = scmp.eq.s32.totalorder %s28, 0
      %p81 = por %p79, %p80
      %s82 = ssub.s32 %s22, %s29
      %p83 = scmp.eq.s32.totalorder %s82, 0
      %s85 = sadd.s32 %s84, 1
      %s86 = scalar_select %p83, %s84, %s85
      %p89 = pneg %p83
      %p90 = scmp.eq.s32.totalorder %s22, 1
      %p91 = por %p89, %p90
      %p92 = scmp.ne.s32.totalorder %s84, %s87
      %p93 = scmp.eq.s32.totalorder %s22, 0
      %p94 = por %p92, %p93
      %p95 = scmp.ne.s32.totalorder %s84, %s87
      %p96 = scmp.eq.s32.totalorder %s27, 1
      %p97 = por %p95, %p96
      %p98 = scmp.ne.s32.totalorder %s87, %s88
      %p99 = scmp.eq.s32.totalorder %s27, 0
      %p100 = por %p98, %p99
      %p101 = scmp.ne.s32.totalorder %s87, %s88
      %p102 = scmp.eq.s32.totalorder %s28, 1
      %p103 = por %p101, %p102
      %p105 = scmp.ne.s32.totalorder %s88, %s104
      %p106 = scmp.eq.s32.totalorder %s28, 0
      %p107 = por %p105, %p106
      %s108 = ssub.s32 %s22, %s29
      %p109 = scmp.eq.s32.totalorder %s108, 0
      %s111 = sadd.s32 %s110, 1
      %s112 = scalar_select %p109, %s110, %s111
      %p115 = pneg %p109
      %p116 = scmp.eq.s32.totalorder %s22, 1
      %p117 = por %p115, %p116
      %p118 = scmp.ne.s32.totalorder %s110, %s113
      %p119 = scmp.eq.s32.totalorder %s22, 0
      %p120 = por %p118, %p119
      %p121 = scmp.ne.s32.totalorder %s110, %s113
      %p122 = scmp.eq.s32.totalorder %s27, 1
      %p123 = por %p121, %p122
      %p124 = scmp.ne.s32.totalorder %s113, %s114
      %p125 = scmp.eq.s32.totalorder %s27, 0
      %p126 = por %p124, %p125
      %p127 = scmp.ne.s32.totalorder %s113, %s114
      %p128 = scmp.eq.s32.totalorder %s28, 1
      %p129 = por %p127, %p128
      %p131 = scmp.ne.s32.totalorder %s114, %s130
      %p132 = scmp.eq.s32.totalorder %s28, 0
      %p133 = por %p131, %p132
      %p134 = scmp.le.s32.totalorder 1, %s22
      %p135 = scmp.lt.s32.totalorder %s22, 3
      %p136 = pnand %p134, %p135
      %p137 = pneg %p136
      // Predicated region
      $region9: #{tpu_custom_call.1} parent=5 // pred_check
        _
      $region10: #{tpu_custom_call.1} parent=5 // pred_check_branch
        %139 = sbr.rel (%p136) target = $region12
      $region11: #{tpu_custom_call.1} parent=5 // pred_region
        %s140 = ssub.s32 %s22, 1
      $region12: #{tpu_custom_call.1} parent=5 // pred_fallthru
        _
      %p141 = scmp.lt.s32.totalorder %s22, 2
      // Predicated region
      $region13: #{tpu_custom_call.1} parent=5 // pred_check
        %p142 = pneg %p141
      $region14: #{tpu_custom_call.1} parent=5 // pred_check_branch
        %144 = sbr.rel (%p142) target = $region16
      $region15: #{tpu_custom_call.1} parent=5 // pred_region
        // Predicated region
        $region17: #{tpu_custom_call.1} parent=15 // pred_check
          %p145 = pneg %p42
        $region18: #{tpu_custom_call.1} parent=15 // pred_check_branch
          %147 = sbr.rel (%p145) target = $region20
        $region19: #{tpu_custom_call.1} parent=15 // pred_region
          %s148 = sand.u32 %s32, 1
          %s149 = scalar_lea.sflag [#allocation3], %s148
          %s150 = sand.u32 %s32, 1
          %s151 = smul.addr %s150, 128
          %s152 = scalar_lea.vmem [#allocation2], %s151
          %s153 = smul.u32 4, %s22
          %s155 = ssub.s32 2048, 2048
          %156 = vsyncadd %s149, %s155
          %s157 = smul.addr %s153, 128
          %s158 = scalar_lea.hbm %s0, %s157
          %s159 = sshll.u32 %s152, 4
          %s160 = int_to_ptr.vmem [resolvable:$true] %s159
          %165 = dma.hbm_to_vmem [thread:$0]  %s158, 2048, %s160, %s149, 1024, 512, 32
        $region20: #{tpu_custom_call.1} parent=15 // pred_fallthru
          _
        // Predicated region
        $region21: #{tpu_custom_call.1} parent=15 // pred_check
          %p166 = pneg %p68
        $region22: #{tpu_custom_call.1} parent=15 // pred_check_branch
          %168 = sbr.rel (%p166) target = $region24
        $region23: #{tpu_custom_call.1} parent=15 // pred_region
          %s169 = sand.u32 %s58, 1
          %s170 = scalar_lea.sflag [#allocation6], %s169
          %s171 = sand.u32 %s58, 1
          %s172 = smul.addr %s171, 32
          %s173 = scalar_lea.vmem [#allocation5], %s172
          %s174 = smul.u32 4, %s22
          %s176 = ssub.s32 512, 512
          %177 = vsyncadd %s170, %s176
          %s178 = smul.addr %s174, 128
          %s179 = scalar_lea.hbm %s1, %s178
          %s181 = sshll.u32 %s173, 4
          %s182 = int_to_ptr.vmem [resolvable:$true] %s181
          %184 = dma.hbm_to_vmem [thread:$0]  %s179, 512, %s182, %s170
        $region24: #{tpu_custom_call.1} parent=15 // pred_fallthru
          _
      $region16: #{tpu_custom_call.1} parent=5 // pred_fallthru
        _
      %p185 = scmp.le.s32.totalorder 1, %s22
      %p186 = scmp.lt.s32.totalorder %s22, 3
      %p187 = pnand %p185, %p186
      %p188 = pneg %p187
      // Predicated region
      $region25: #{tpu_custom_call.1} parent=5 // pred_check
        _
      $region26: #{tpu_custom_call.1} parent=5 // pred_check_branch
        %190 = sbr.rel (%p187) target = $region28
      $region27: #{tpu_custom_call.1} parent=5 // pred_region
        %s191 = ssub.s32 %s22, 1
        %s192 = sand.u32 %s35, 1
        %s193 = scalar_lea.sflag [#allocation3], %s192
        %s194 = sand.u32 %s35, 1
        %s195 = smul.addr %s194, 128
        %s196 = scalar_lea.vmem [#allocation2], %s195
        // Predicated region
        $region29: #{tpu_custom_call.1} parent=27 // pred_check
          %p197 = pneg %p48
        $region30: #{tpu_custom_call.1} parent=27 // pred_check_branch
          %199 = sbr.rel (%p197) target = $region32
        $region31: #{tpu_custom_call.1} parent=27 // pred_region
          %200 = dma.done %s193, 2048
        $region32: #{tpu_custom_call.1} parent=27 // pred_fallthru
          _
        %s201 = sand.u32 %s61, 1
        %s202 = scalar_lea.sflag [#allocation6], %s201
        %s203 = sand.u32 %s61, 1
        %s204 = smul.addr %s203, 32
        %s205 = scalar_lea.vmem [#allocation5], %s204
        // Predicated region
        $region33: #{tpu_custom_call.1} parent=27 // pred_check
          %p206 = pneg %p74
        $region34: #{tpu_custom_call.1} parent=27 // pred_check_branch
          %208 = sbr.rel (%p206) target = $region36
        $region35: #{tpu_custom_call.1} parent=27 // pred_region
          %209 = dma.done %s202, 512
        $region36: #{tpu_custom_call.1} parent=27 // pred_fallthru
          _
        %s210 = sand.u32 %s35, 1
        %s211 = scalar_lea.sflag [#allocation3], %s210
        %s212 = sand.u32 %s35, 1
        %s213 = smul.addr %s212, 128
        %s214 = scalar_lea.vmem [#allocation2], %s213
        %p215 = pneg %p48
        %p216 = pneg %p45
        %s217 = sand.u32 %s61, 1
        %s218 = scalar_lea.sflag [#allocation6], %s217
        %s219 = sand.u32 %s61, 1
        %s220 = smul.addr %s219, 32
        %s221 = scalar_lea.vmem [#allocation5], %s220
        %p222 = pneg %p74
        %p223 = pneg %p71
        %p224 = pneg %p100
        %p225 = pneg %p97
        %s226 = sand.u32 %s87, 1
        %s227 = scalar_lea.sflag [#allocation4], %s226
        %s228 = sand.u32 %s87, 1
        %s229 = smul.addr %s228, 4
        %s230 = scalar_lea.vmem [#allocation7], %s229
        %p231 = pneg %p126
        %p232 = pneg %p123
        %s233 = sand.u32 %s113, 1
        %s234 = scalar_lea.sflag [#allocation9], %s233
        %s235 = sand.u32 %s113, 1
        %s236 = smul.addr %s235, 4
        %s237 = scalar_lea.vmem [#allocation8], %s236
        %s238 = smul.u32 4, %s27
        %s239 = smul.u32 4, %s27
        %s240 = smul.u32 4, %s27
        %s241 = smul.u32 4, %s27
        %v242 = vld [vmem:[%s196] sm:$0xff]
        %v243 = vld [vmem:[%s196 + $0x8] sm:$0xff]
        %v244 = vld [vmem:[%s196 + $0x10] sm:$0xff]
        %v245 = vld [vmem:[%s196 + $0x18] sm:$0xff]
        %v246 = vld [vmem:[%s196 + $0x20] sm:$0xff]
        %v247 = vld [vmem:[%s196 + $0x28] sm:$0xff]
        %v248 = vld [vmem:[%s196 + $0x30] sm:$0xff]
        %v249 = vld [vmem:[%s196 + $0x38] sm:$0xff]
        %v250 = vld [vmem:[%s196 + $0x40] sm:$0xff]
        %v251 = vld [vmem:[%s196 + $0x48] sm:$0xff]
        %v252 = vld [vmem:[%s196 + $0x50] sm:$0xff]
        %v253 = vld [vmem:[%s196 + $0x58] sm:$0xff]
        %v254 = vld [vmem:[%s196 + $0x60] sm:$0xff]
        %v255 = vld [vmem:[%s196 + $0x68] sm:$0xff]
        %v256 = vld [vmem:[%s196 + $0x70] sm:$0xff]
        %v257 = vld [vmem:[%s196 + $0x78] sm:$0xff]
        %v258 = vmul.f32 %v242, 5.0
        %v259 = vmul.f32 %v243, 5.0
        %v260 = vmul.f32 %v244, 5.0
        %v261 = vmul.f32 %v245, 5.0
        %v262 = vmul.f32 %v246, 5.0
        %v263 = vmul.f32 %v247, 5.0
        %v264 = vmul.f32 %v248, 5.0
        %v265 = vmul.f32 %v249, 5.0
        %v266 = vmul.f32 %v250, 5.0
        %v267 = vmul.f32 %v251, 5.0
        %v268 = vmul.f32 %v252, 5.0
        %v269 = vmul.f32 %v253, 5.0
        %v270 = vmul.f32 %v254, 5.0
        %v271 = vmul.f32 %v255, 5.0
        %v272 = vmul.f32 %v256, 5.0
        %v273 = vmul.f32 %v257, 5.0
        %v274 = vld [vmem:[%s205] sm:$0xff]
        %v275 = vld [vmem:[%s205 + $0x8] sm:$0xff]
        %v276 = vld [vmem:[%s205 + $0x10] sm:$0xff]
        %v277 = vld [vmem:[%s205 + $0x18] sm:$0xff]
        %v278 = vunpack.c.0.s8 %v274
        %v279 = vunpack.c.0.s8 %v275
        %v280 = vunpack.c.0.s8 %v276
        %v281 = vunpack.c.0.s8 %v277
        %v282 = vunpack.c.1.s8 %v274
        %v283 = vunpack.c.1.s8 %v275
        %v284 = vunpack.c.1.s8 %v276
        %v285 = vunpack.c.1.s8 %v277
        %v286 = vunpack.c.2.s8 %v274
        %v287 = vunpack.c.2.s8 %v275
        %v288 = vunpack.c.2.s8 %v276
        %v289 = vunpack.c.2.s8 %v277
        %v290 = vunpack.c.3.s8 %v274
        %v291 = vunpack.c.3.s8 %v275
        %v292 = vunpack.c.3.s8 %v276
        %v293 = vunpack.c.3.s8 %v277
        %v294 = vcvt.s32.f32 %v278
        %v295 = vcvt.s32.f32 %v279
        %v296 = vcvt.s32.f32 %v280
        %v297 = vcvt.s32.f32 %v281
        %v298 = vcvt.s32.f32 %v282
        %v299 = vcvt.s32.f32 %v283
        %v300 = vcvt.s32.f32 %v284
        %v301 = vcvt.s32.f32 %v285
        %v302 = vcvt.s32.f32 %v286
        %v303 = vcvt.s32.f32 %v287
        %v304 = vcvt.s32.f32 %v288
        %v305 = vcvt.s32.f32 %v289
        %v306 = vcvt.s32.f32 %v290
        %v307 = vcvt.s32.f32 %v291
        %v308 = vcvt.s32.f32 %v292
        %v309 = vcvt.s32.f32 %v293
        %v310 = vmul.f32 %v258, %v294
        %v311 = vmul.f32 %v259, %v295
        %v312 = vmul.f32 %v260, %v296
        %v313 = vmul.f32 %v261, %v297
        %v314 = vmul.f32 %v262, %v298
        %v315 = vmul.f32 %v263, %v299
        %v316 = vmul.f32 %v264, %v300
        %v317 = vmul.f32 %v265, %v301
        %v318 = vmul.f32 %v266, %v302
        %v319 = vmul.f32 %v267, %v303
        %v320 = vmul.f32 %v268, %v304
        %v321 = vmul.f32 %v269, %v305
        %v322 = vmul.f32 %v270, %v306
        %v323 = vmul.f32 %v271, %v307
        %v324 = vmul.f32 %v272, %v308
        %v325 = vmul.f32 %v273, %v309
        %v326 = vadd.f32 %v310, %v314
        %v327 = vadd.f32 %v326, %v318
        %v328 = vadd.f32 %v327, %v322
        %v329 = vrot.slane %v328, 4
        %v330 = vadd.f32 %v328, %v329
        %v331 = vrot.slane %v330, 2
        %v332 = vadd.f32 %v330, %v331
        %v333 = vrot.slane %v332, 1
        %v334 = vadd.f32 %v332, %v333
        %v335 = vadd.f32 %v311, %v315
        %v336 = vadd.f32 %v335, %v319
        %v337 = vadd.f32 %v336, %v323
        %v338 = vrot.slane %v337, 4
        %v339 = vadd.f32 %v337, %v338
        %v340 = vrot.slane %v339, 2
        %v341 = vadd.f32 %v339, %v340
        %v342 = vrot.slane %v341, 1
        %v343 = vadd.f32 %v341, %v342
        %v344 = vadd.f32 %v312, %v316
        %v345 = vadd.f32 %v344, %v320
        %v346 = vadd.f32 %v345, %v324
        %v347 = vrot.slane %v346, 4
        %v348 = vadd.f32 %v346, %v347
        %v349 = vrot.slane %v348, 2
        %v350 = vadd.f32 %v348, %v349
        %v351 = vrot.slane %v350, 1
        %v352 = vadd.f32 %v350, %v351
        %v353 = vadd.f32 %v313, %v317
        %v354 = vadd.f32 %v353, %v321
        %v355 = vadd.f32 %v354, %v325
        %v356 = vrot.slane %v355, 4
        %v357 = vadd.f32 %v355, %v356
        %v358 = vrot.slane %v357, 2
        %v359 = vadd.f32 %v357, %v358
        %v360 = vrot.slane %v359, 1
        %v361 = vadd.f32 %v359, %v360
        %v366 = vcombine.low %v334, %v343
        %v367 = vcombine.low %v352, %v361
        %v369 = vunpack.c.l.s4 1966171168
        %v370 = vunpack.c.0.s8 %v369
        %v371 = vlaneseq
        %v372 = vshrl.u32 %v371, 7
        %v373 = vsub.s32 %v370, %v372
        %v374 = vrot.slane %v366, %v373
        %v376 = vunpack.c.l.s4 1966171168
        %v377 = vunpack.c.0.s8 %v376
        %v378 = vlaneseq
        %v379 = vshrl.u32 %v378, 7
        %v380 = vsub.s32 %v377, %v379
        %v381 = vrot.slane %v367, %v380
        %v382 = vcombine.low %v374, %v381
        %v384 = vunpack.c.l.s4 1966171168
        %v385 = vunpack.c.0.s8 %v384
        %v386 = vlaneseq
        %v387 = vshrl.u32 %v386, 7
        %v388 = vsub.s32 %v385, %v387
        %v389 = vrot.slane %v382, %v388
        %v391 = vlaneseq
        %vm392 = vcmp.ge.s32.totalorder %v391, 0
        %vm393 = vcmp.lt.s32.totalorder %v391, 512
        %vm394 = vmand %vm392, %vm393
        %395 = vst.msk [vmem:[%s237] sm:$0xf] %vm394, %v389
        %vm396 = vcmp.ne.f32.partialorder %v294, 0.0
        %vm397 = vcmp.ne.f32.partialorder %v295, 0.0
        %vm398 = vcmp.ne.f32.partialorder %v296, 0.0
        %vm399 = vcmp.ne.f32.partialorder %v297, 0.0
        %vm400 = vcmp.ne.f32.partialorder %v298, 0.0
        %vm401 = vcmp.ne.f32.partialorder %v299, 0.0
        %vm402 = vcmp.ne.f32.partialorder %v300, 0.0
        %vm403 = vcmp.ne.f32.partialorder %v301, 0.0
        %vm404 = vcmp.ne.f32.partialorder %v302, 0.0
        %vm405 = vcmp.ne.f32.partialorder %v303, 0.0
        %vm406 = vcmp.ne.f32.partialorder %v304, 0.0
        %vm407 = vcmp.ne.f32.partialorder %v305, 0.0
        %vm408 = vcmp.ne.f32.partialorder %v306, 0.0
        %vm409 = vcmp.ne.f32.partialorder %v307, 0.0
        %vm410 = vcmp.ne.f32.partialorder %v308, 0.0
        %vm411 = vcmp.ne.f32.partialorder %v309, 0.0
        %v412 = vsel %vm396, 0.0, %v258
        %v413 = vsel %vm397, 0.0, %v259
        %v414 = vsel %vm398, 0.0, %v260
        %v415 = vsel %vm399, 0.0, %v261
        %v416 = vsel %vm400, 0.0, %v262
        %v417 = vsel %vm401, 0.0, %v263
        %v418 = vsel %vm402, 0.0, %v264
        %v419 = vsel %vm403, 0.0, %v265
        %v420 = vsel %vm404, 0.0, %v266
        %v421 = vsel %vm405, 0.0, %v267
        %v422 = vsel %vm406, 0.0, %v268
        %v423 = vsel %vm407, 0.0, %v269
        %v424 = vsel %vm408, 0.0, %v270
        %v425 = vsel %vm409, 0.0, %v271
        %v426 = vsel %vm410, 0.0, %v272
        %v427 = vsel %vm411, 0.0, %v273
        %v428 = vmax.f32 %v412, %v416
        %v429 = vmax.f32 %v428, %v420
        %v430 = vmax.f32 %v429, %v424
        %v431 = vrot.slane %v430, 4
        %v432 = vmax.f32 %v430, %v431
        %v433 = vrot.slane %v432, 2
        %v434 = vmax.f32 %v432, %v433
        %v435 = vrot.slane %v434, 1
        %v436 = vmax.f32 %v434, %v435
        %v437 = vmax.f32 %v413, %v417
        %v438 = vmax.f32 %v437, %v421
        %v439 = vmax.f32 %v438, %v425
        %v440 = vrot.slane %v439, 4
        %v441 = vmax.f32 %v439, %v440
        %v442 = vrot.slane %v441, 2
        %v443 = vmax.f32 %v441, %v442
        %v444 = vrot.slane %v443, 1
        %v445 = vmax.f32 %v443, %v444
        %v446 = vmax.f32 %v414, %v418
        %v447 = vmax.f32 %v446, %v422
        %v448 = vmax.f32 %v447, %v426
        %v449 = vrot.slane %v448, 4
        %v450 = vmax.f32 %v448, %v449
        %v451 = vrot.slane %v450, 2
        %v452 = vmax.f32 %v450, %v451
        %v453 = vrot.slane %v452, 1
        %v454 = vmax.f32 %v452, %v453
        %v455 = vmax.f32 %v415, %v419
        %v456 = vmax.f32 %v455, %v423
        %v457 = vmax.f32 %v456, %v427
        %v458 = vrot.slane %v457, 4
        %v459 = vmax.f32 %v457, %v458
        %v460 = vrot.slane %v459, 2
        %v461 = vmax.f32 %v459, %v460
        %v462 = vrot.slane %v461, 1
        %v463 = vmax.f32 %v461, %v462
        %v464 = vsub.f32 %v412, %v436
        %v465 = vsub.f32 %v413, %v445
        %v466 = vsub.f32 %v414, %v454
        %v467 = vsub.f32 %v415, %v463
        %v468 = vsub.f32 %v416, %v436
        %v469 = vsub.f32 %v417, %v445
        %v470 = vsub.f32 %v418, %v454
        %v471 = vsub.f32 %v419, %v463
        %v472 = vsub.f32 %v420, %v436
        %v473 = vsub.f32 %v421, %v445
        %v474 = vsub.f32 %v422, %v454
        %v475 = vsub.f32 %v423, %v463
        %v476 = vsub.f32 %v424, %v436
        %v477 = vsub.f32 %v425, %v445
        %v478 = vsub.f32 %v426, %v454
        %v479 = vsub.f32 %v427, %v463
        %v480 = vmul.f32 %v464, 1.442695
        %v481 = vpow.pop %v480
        %v482 = vmul.f32 %v465, 1.442695
        %v483 = vpow.pop %v482
        %v484 = vmul.f32 %v466, 1.442695
        %v485 = vpow.pop %v484
        %v486 = vmul.f32 %v467, 1.442695
        %v487 = vpow.pop %v486
        %v488 = vmul.f32 %v468, 1.442695
        %v489 = vpow.pop %v488
        %v490 = vmul.f32 %v469, 1.442695
        %v491 = vpow.pop %v490
        %v492 = vmul.f32 %v470, 1.442695
        %v493 = vpow.pop %v492
        %v494 = vmul.f32 %v471, 1.442695
        %v495 = vpow.pop %v494
        %v496 = vmul.f32 %v472, 1.442695
        %v497 = vpow.pop %v496
        %v498 = vmul.f32 %v473, 1.442695
        %v499 = vpow.pop %v498
        %v500 = vmul.f32 %v474, 1.442695
        %v501 = vpow.pop %v500
        %v502 = vmul.f32 %v475, 1.442695
        %v503 = vpow.pop %v502
        %v504 = vmul.f32 %v476, 1.442695
        %v505 = vpow.pop %v504
        %v506 = vmul.f32 %v477, 1.442695
        %v507 = vpow.pop %v506
        %v508 = vmul.f32 %v478, 1.442695
        %v509 = vpow.pop %v508
        %v510 = vmul.f32 %v479, 1.442695
        %v511 = vpow.pop %v510
        %v512 = vadd.f32 %v481, %v489
        %v513 = vadd.f32 %v512, %v497
        %v514 = vadd.f32 %v513, %v505
        %v515 = vrot.slane %v514, 4
        %v516 = vadd.f32 %v514, %v515
        %v517 = vrot.slane %v516, 2
        %v518 = vadd.f32 %v516, %v517
        %v519 = vrot.slane %v518, 1
        %v520 = vadd.f32 %v518, %v519
        %v521 = vadd.f32 %v483, %v491
        %v522 = vadd.f32 %v521, %v499
        %v523 = vadd.f32 %v522, %v507
        %v524 = vrot.slane %v523, 4
        %v525 = vadd.f32 %v523, %v524
        %v526 = vrot.slane %v525, 2
        %v527 = vadd.f32 %v525, %v526
        %v528 = vrot.slane %v527, 1
        %v529 = vadd.f32 %v527, %v528
        %v530 = vadd.f32 %v485, %v493
        %v531 = vadd.f32 %v530, %v501
        %v532 = vadd.f32 %v531, %v509
        %v533 = vrot.slane %v532, 4
        %v534 = vadd.f32 %v532, %v533
        %v535 = vrot.slane %v534, 2
        %v536 = vadd.f32 %v534, %v535
        %v537 = vrot.slane %v536, 1
        %v538 = vadd.f32 %v536, %v537
        %v539 = vadd.f32 %v487, %v495
        %v540 = vadd.f32 %v539, %v503
        %v541 = vadd.f32 %v540, %v511
        %v542 = vrot.slane %v541, 4
        %v543 = vadd.f32 %v541, %v542
        %v544 = vrot.slane %v543, 2
        %v545 = vadd.f32 %v543, %v544
        %v546 = vrot.slane %v545, 1
        %v547 = vadd.f32 %v545, %v546
        %v548 = vlog2.pop %v520
        %v549 = vmul.f32 %v548, 0.6931472
        %v550 = vlog2.pop %v529
        %v551 = vmul.f32 %v550, 0.6931472
        %v552 = vlog2.pop %v538
        %v553 = vmul.f32 %v552, 0.6931472
        %v554 = vlog2.pop %v547
        %v555 = vmul.f32 %v554, 0.6931472
        %v556 = vadd.f32 %v436, %v549
        %v557 = vadd.f32 %v445, %v551
        %v558 = vadd.f32 %v454, %v553
        %v559 = vadd.f32 %v463, %v555
        %v564 = vcombine.low %v556, %v557
        %v565 = vcombine.low %v558, %v559
        %v567 = vunpack.c.l.s4 1966171168
        %v568 = vunpack.c.0.s8 %v567
        %v569 = vlaneseq
        %v570 = vshrl.u32 %v569, 7
        %v571 = vsub.s32 %v568, %v570
        %v572 = vrot.slane %v564, %v571
        %v574 = vunpack.c.l.s4 1966171168
        %v575 = vunpack.c.0.s8 %v574
        %v576 = vlaneseq
        %v577 = vshrl.u32 %v576, 7
        %v578 = vsub.s32 %v575, %v577
        %v579 = vrot.slane %v565, %v578
        %v580 = vcombine.low %v572, %v579
        %v582 = vunpack.c.l.s4 1966171168
        %v583 = vunpack.c.0.s8 %v582
        %v584 = vlaneseq
        %v585 = vshrl.u32 %v584, 7
        %v586 = vsub.s32 %v583, %v585
        %v587 = vrot.slane %v580, %v586
        %589 = vst.msk [vmem:[%s230] sm:$0xf] %vm394, %v587
        %s590 = sand.u32 %s87, 1
        %s591 = scalar_lea.sflag [#allocation4], %s590
        %s592 = sand.u32 %s87, 1
        %s593 = smul.addr %s592, 4
        %s594 = scalar_lea.vmem [#allocation7], %s593
        %s595 = sand.u32 %s113, 1
        %s596 = scalar_lea.sflag [#allocation9], %s595
        %s597 = sand.u32 %s113, 1
        %s598 = smul.addr %s597, 4
        %s599 = scalar_lea.vmem [#allocation8], %s598
        // Predicated region
        $region37: #{tpu_custom_call.1} parent=27 // pred_check
          %p600 = pneg %p97
        $region38: #{tpu_custom_call.1} parent=27 // pred_check_branch
          %602 = sbr.rel (%p600) target = $region40
        $region39: #{tpu_custom_call.1} parent=27 // pred_region
          %s603 = smul.u32 4, %s27
          %s605 = ssub.s32 64, 64
          %606 = vsyncadd %s591, %s605
          %s607 = smul.addr %s603, 16
          %s608 = scalar_lea.hbm %s2, %s607
          %s610 = sshll.u32 %s594, 4
          %s611 = int_to_ptr.vmem [resolvable:$true] %s610
          %613 = dma.vmem_to_hbm [thread:$0]  %s611, 64, %s608, %s591
        $region40: #{tpu_custom_call.1} parent=27 // pred_fallthru
          _
        // Predicated region
        $region41: #{tpu_custom_call.1} parent=27 // pred_check
          %p614 = pneg %p123
        $region42: #{tpu_custom_call.1} parent=27 // pred_check_branch
          %616 = sbr.rel (%p614) target = $region44
        $region43: #{tpu_custom_call.1} parent=27 // pred_region
          %s617 = smul.u32 4, %s27
          %s619 = ssub.s32 64, 64
          %620 = vsyncadd %s596, %s619
          %s621 = smul.addr %s617, 16
          %s622 = scalar_lea.hbm %s3, %s621
          %s624 = sshll.u32 %s599, 4
          %s625 = int_to_ptr.vmem [resolvable:$true] %s624
          %627 = dma.vmem_to_hbm [thread:$0]  %s625, 64, %s622, %s596
        $region44: #{tpu_custom_call.1} parent=27 // pred_fallthru
          _
      $region28: #{tpu_custom_call.1} parent=5 // pred_fallthru
        _
      %p628 = scmp.le.s32.totalorder 2, %s22
      // Predicated region
      $region45: #{tpu_custom_call.1} parent=5 // pred_check
        %p629 = pneg %p628
      $region46: #{tpu_custom_call.1} parent=5 // pred_check_branch
        %631 = sbr.rel (%p629) target = $region48
      $region47: #{tpu_custom_call.1} parent=5 // pred_region
        %s632 = ssub.s32 %s22, 2
        // Predicated region
        $region49: #{tpu_custom_call.1} parent=47 // pred_check
          %p633 = pneg %p103
        $region50: #{tpu_custom_call.1} parent=47 // pred_check_branch
          %635 = sbr.rel (%p633) target = $region52
        $region51: #{tpu_custom_call.1} parent=47 // pred_region
          %s636 = sand.u32 %s88, 1
          %s637 = scalar_lea.sflag [#allocation4], %s636
          %s638 = sand.u32 %s88, 1
          %s639 = smul.addr %s638, 4
          %s640 = scalar_lea.vmem [#allocation7], %s639
          %641 = dma.done %s637, 64
        $region52: #{tpu_custom_call.1} parent=47 // pred_fallthru
          _
        // Predicated region
        $region53: #{tpu_custom_call.1} parent=47 // pred_check
          %p642 = pneg %p129
        $region54: #{tpu_custom_call.1} parent=47 // pred_check_branch
          %644 = sbr.rel (%p642) target = $region56
        $region55: #{tpu_custom_call.1} parent=47 // pred_region
          %s645 = sand.u32 %s114, 1
          %s646 = scalar_lea.sflag [#allocation9], %s645
          %s647 = sand.u32 %s114, 1
          %s648 = smul.addr %s647, 4
          %s649 = scalar_lea.vmem [#allocation8], %s648
          %650 = dma.done %s646, 64
        $region56: #{tpu_custom_call.1} parent=47 // pred_fallthru
          _
      $region48: #{tpu_custom_call.1} parent=5 // pred_fallthru
        _
    $region6: #{tpu_custom_call.1} parent=1 // loop_footer
      %s26 = sadd.s32 1, %s22
    $region7: #{tpu_custom_call.1} parent=1 // loop_footer_branch
      %21 = sbr.rel target = $region3
    $region8: #{tpu_custom_call.1} parent=1 // loop_exit
      _
    %651 = vsyncpa [#allocation3], 1
    %s652 = scalar_lea.sflag [#allocation3], 1
    %653 = vsyncpa %s652, 1
    %654 = vsyncpa [#allocation6], 1
    %s655 = scalar_lea.sflag [#allocation6], 1
    %656 = vsyncpa %s655, 1
    %657 = vsyncpa [#allocation4], 1
    %s658 = scalar_lea.sflag [#allocation4], 1
    %659 = vsyncpa %s658, 1
    %660 = vsyncpa [#allocation9], 1
    %s661 = scalar_lea.sflag [#allocation9], 1
    %662 = vsyncpa %s661, 1

</llo_original>
